<compile_context>
chip_gen: v7x
topology: tpu7x:2x2x1
jax: 0.10.0
libtpu: 0.0.40
codegen_flags: <defaults>
</compile_context>

<pallas_src>
import functools

import jax
import jax.numpy as jnp
from jax.experimental import pallas as pl
from jax.experimental.pallas import tpu as pltpu

EPS = 1e-5
LEAKY_SLOPE = 0.2
KH = KW = 4
STRIDE = 2
PAD = 1


def _round_up(x, m):
    return (x + m - 1) // m * m


def _cdiv(a, b):
    return -(-a // b)


# -------- Pass 1: conv matmul (channels on sublanes) + per-channel stats -------- #
def conv_stats_kernel(pT_ref, wT_ref, y_ref, sum_ref, sumsq_ref):
    @pl.when(jnp.logical_and(pl.program_id(0) == 0, pl.program_id(1) == 0))
    def _():
        sum_ref[...] = jnp.zeros_like(sum_ref)
        sumsq_ref[...] = jnp.zeros_like(sumsq_ref)

    # bf16 inputs, f32 accumulation on the MXU; result is (Cs, TM): channels on
    # sublanes, spatial positions lane-dense.
    y = jnp.dot(wT_ref[...], pT_ref[0], preferred_element_type=jnp.float32)
    # BatchNorm partial sums from the in-register f32 result (padded columns and
    # padded channel rows are all-zero -> no-op on the stats).
    sum_ref[...] += jnp.sum(y, axis=1, keepdims=True)
    sumsq_ref[...] += jnp.sum(y * y, axis=1, keepdims=True)
    # bf16 intermediate: halves the dominant write + re-read of y.
    y_ref[0] = y.astype(jnp.bfloat16)


# ----- Pass 2: folded (BatchNorm * Dropout2d) affine + LeakyReLU, per channel ----- #
def bn_act_kernel(y_ref, scale_ref, shift_ref, o_ref):
    z = y_ref[0].astype(jnp.float32) * scale_ref[0] + shift_ref[0]  # one FMA/elem
    z = jnp.where(z >= 0.0, z, LEAKY_SLOPE * z)                     # LeakyReLU(0.2)
    o_ref[0] = z.astype(o_ref.dtype)


def _im2col_T(x, ohw_pad, ckp):
    """x: (N,C,H,W) -> (N, Ckp, OHW_pad) bf16; rows (c,kh,kw), cols (oh*OW+ow)."""
    N, C, H, W = x.shape
    OH = (H + 2 * PAD - KH) // STRIDE + 1
    OW = (W + 2 * PAD - KW) // STRIDE + 1
    xp = jnp.pad(x, ((0, 0), (0, 0), (PAD, PAD), (PAD, PAD)))
    cols = []
    for kh in range(KH):
        for kw in range(KW):
            cols.append(xp[:, :, kh:kh + STRIDE * OH:STRIDE,
                              kw:kw + STRIDE * OW:STRIDE])          # (N, C, OH, OW)
    p = jnp.stack(cols, axis=0).reshape(KH, KW, N, C, OH, OW)
    p = p.transpose(2, 3, 0, 1, 4, 5)                               # (N, C, KH, KW, OH, OW)
    p = p.reshape(N, C * KH * KW, OH * OW)
    # Zero padding: padded rows/cols contribute 0 to conv, sum and sumsq.
    p = jnp.pad(p, ((0, 0), (0, ckp - C * KH * KW), (0, ohw_pad - OH * OW)))
    return p.astype(jnp.bfloat16), OH, OW


def _pick_tiles(ohw, ckp, cs, budget=12 << 20):
    """Spatial (lane) tile + tiles-per-sample, minimizing per-sample padding.

    Budget keeps double-buffered blocks well under the v7x 32 MiB scoped VMEM
    default (64 MiB physical); v5e/v6e have much more headroom.
    """
    tm_max = 2048
    while tm_max > 128 and (2 * (tm_max * ckp * 2 + cs * tm_max * 2)
                            + 2 * cs * ckp * 2) > budget:
        tm_max //= 2
    if ohw <= tm_max:
        return max(8, _round_up(ohw, 8)), 1          # single lane-dim tile per sample
    n_t = _cdiv(ohw, tm_max)
    tm = _round_up(_cdiv(ohw, n_t), 128)             # multi-tile: lane-dense tiles
    return tm, n_t
    # TODO(synk): very large C_in (huge Ckp) would also want a K-split grid axis
    # with an f32 acc scratch instead of shrinking TM only.


@functools.partial(jax.jit, static_argnames=("norm",))
def convolutional_block(x, weight, gamma, beta, drop_mask, norm=True):
    """x: (N,C_in,H,W) NCHW; weight: (C_out,C_in,4,4); drop_mask: (N,C_out) pre-scaled."""
    N, C_in, H, W = x.shape
    C_out = weight.shape[0]
    Ck = C_in * KH * KW

    Ckp = _round_up(Ck, 128)       # lane-dense MXU contraction dim
    Cs = _round_up(C_out, 8)       # channels live on sublanes: pad to 8, not 128

    OH = (H + 2 * PAD - KH) // STRIDE + 1
    OW = (W + 2 * PAD - KW) // STRIDE + 1
    OHW = OH * OW
    TM, n_t = _pick_tiles(OHW, Ckp, Cs)
    OHW_pad = TM * n_t             # minimal per-sample padding; tiles never
    M_pad = N * OHW_pad            # cross sample boundaries.

    # TODO(synk): patch extraction is still an XLA-side expansion (~4x input
    # bytes for k=4,s=2); an in-kernel space-to-depth + (kh,kw) accumulation
    # pass would cut pass-1 input HBM traffic further.
    patchesT, _, _ = _im2col_T(x, OHW_pad, Ckp)                    # (N, Ckp, OHW_pad) bf16

    # Weight as (Cs, Ckp): output channels on sublanes, contraction lane-dense.
    wT = weight.reshape(C_out, Ck)
    wT = jnp.pad(wT, ((0, Cs - C_out), (0, Ckp - Ck))).astype(jnp.bfloat16)

    flops = 2 * Cs * Ckp * M_pad
    bytes_accessed = (patchesT.size * 2 + wT.size * 2
                      + N * Cs * OHW_pad * 2 + 2 * Cs * 4)

    # ---- Pass 1: tiled conv + global per-channel sum / sumsq accumulation ---- #
    # TODO(synk): on v7x (2 TensorCores) a leading size-2 "parallel" grid axis
    # with (2, Cs, 1) partial stats would use both cores; single-core here.
    y3, s, sq = pl.pallas_call(
        conv_stats_kernel,
        out_shape=(jax.ShapeDtypeStruct((N, Cs, OHW_pad), jnp.bfloat16),
                   jax.ShapeDtypeStruct((Cs, 1), jnp.float32),
                   jax.ShapeDtypeStruct((Cs, 1), jnp.float32)),
        grid=(N, n_t),
        in_specs=[pl.BlockSpec((1, Ckp, TM), lambda n, t: (n, 0, t)),
                  pl.BlockSpec((Cs, Ckp), lambda n, t: (0, 0))],
        out_specs=(pl.BlockSpec((1, Cs, TM), lambda n, t: (n, 0, t)),
                   pl.BlockSpec((Cs, 1), lambda n, t: (0, 0)),
                   pl.BlockSpec((Cs, 1), lambda n, t: (0, 0))),
        compiler_params=pltpu.CompilerParams(
            # stats accumulate across both grid axes -> both stay "arbitrary".
            dimension_semantics=("arbitrary", "arbitrary"),
            vmem_limit_bytes=32 * 1024 * 1024),
        cost_estimate=pl.CostEstimate(flops=flops, transcendentals=0,
                                      bytes_accessed=bytes_accessed),
    )(patchesT, wT)

    # ---- Fold BatchNorm (training-mode batch stats) into one scale/shift pair ---- #
    gamma_p = jnp.pad(gamma.astype(jnp.float32), (0, Cs - C_out))
    beta_p = jnp.pad(beta.astype(jnp.float32), (0, Cs - C_out))
    if norm:
        inv_m = 1.0 / float(N * OHW)
        mean = s[:, 0] * inv_m
        var = jnp.maximum(sq[:, 0] * inv_m - mean * mean, 0.0)    # clamp cancellation
        scale_c = gamma_p * jax.lax.rsqrt(var + EPS)
        shift_c = beta_p - mean * scale_c
    else:
        scale_c = jnp.ones((Cs,), jnp.float32)
        shift_c = jnp.zeros((Cs,), jnp.float32)
    # TODO(synk): BatchNorm2d running_mean / running_var momentum buffer updates
    # (module training state) are not produced here; only the forward output is.

    # Dropout2d is a per-(sample, channel) multiplier m >= 0; LeakyReLU is
    # positively homogeneous, so m * LeakyReLU(s*y + b) == LeakyReLU(m*s*y + m*b).
    mask_p = jnp.pad(drop_mask.astype(jnp.float32), ((0, 0), (0, Cs - C_out)))
    scale_nc = (scale_c[None, :] * mask_p).reshape(N, Cs, 1)
    shift_nc = (shift_c[None, :] * mask_p).reshape(N, Cs, 1)

    # ---- Pass 2: folded affine + LeakyReLU, fully parallel grid ---- #
    out3 = pl.pallas_call(
        bn_act_kernel,
        out_shape=jax.ShapeDtypeStruct((N, Cs, OHW_pad), x.dtype),
        grid=(N, n_t),
        in_specs=[pl.BlockSpec((1, Cs, TM), lambda n, t: (n, 0, t)),
                  pl.BlockSpec((1, Cs, 1), lambda n, t: (n, 0, 0)),
                  pl.BlockSpec((1, Cs, 1), lambda n, t: (n, 0, 0))],
        out_specs=pl.BlockSpec((1, Cs, TM), lambda n, t: (n, 0, t)),
        compiler_params=pltpu.CompilerParams(
            dimension_semantics=("parallel", "parallel"),
            vmem_limit_bytes=32 * 1024 * 1024),
    )(y3, scale_nc, shift_nc)

    # Output is already channel-major; the slice is a no-op when C_out % 8 == 0
    # and OHW needed no padding, and the reshape to NCHW is metadata-only.
    out = out3[:, :C_out, :OHW]
    return out.reshape(N, C_out, OH, OW)


if __name__ == "__main__":
    key = jax.random.PRNGKey(0)
    k_x, k_w, k_d = jax.random.split(key, 3)

    N, C_in, H, W = 2, 4, 16, 16
    C_out = 8
    dropout_p = 0.25

    x = jax.random.normal(k_x, (N, C_in, H, W), jnp.float32)

    # Deterministic parameter init (PyTorch-like kaiming-uniform bound for conv).
    fan_in = C_in * KH * KW
    bound = (1.0 / fan_in) ** 0.5
    weight = jax.random.uniform(k_w, (C_out, C_in, KH, KW), jnp.float32,
                                -bound, bound)
    gamma = jnp.ones((C_out,), jnp.float32)   # BatchNorm2d default weight
    beta = jnp.zeros((C_out,), jnp.float32)   # BatchNorm2d default bias

    # Dropout2d: whole (sample, channel) planes, scaled by 1/(1-p), training mode.
    keep = jax.random.bernoulli(k_d, 1.0 - dropout_p, (N, C_out)).astype(jnp.float32)
    drop_mask = keep / (1.0 - dropout_p)

    out = convolutional_block(x, weight, gamma, beta, drop_mask)
    jax.block_until_ready(out)

    # Pure-JAX f32 reference (same semantics, same dropout mask).
    ref = jax.lax.conv_general_dilated(
        x, weight, (STRIDE, STRIDE), ((PAD, PAD), (PAD, PAD)),
        dimension_numbers=("NCHW", "OIHW", "NCHW"))
    mean = ref.mean(axis=(0, 2, 3), keepdims=True)
    var = ref.var(axis=(0, 2, 3), keepdims=True)
    ref = (ref - mean) / jnp.sqrt(var + EPS)
    ref = ref * gamma[None, :, None, None] + beta[None, :, None, None]
    ref = jnp.where(ref >= 0, ref, LEAKY_SLOPE * ref)
    ref = ref * drop_mask[:, :, None, None]

    assert out.shape == (N, C_out, H // 2, W // 2)
    # bf16 MXU inputs / bf16 y intermediate vs. f32 reference -> loose tolerance.
    max_err = float(jnp.max(jnp.abs(out - ref)))
    assert jnp.allclose(out, ref, atol=5e-2, rtol=5e-2), f"max abs err {max_err}"

    print("KERNEL_OK")
</pallas_src>

<mosaic_0001>
module attributes {stable_mosaic.version = 11 : i64} {
  func.func @conv_stats_kernel(%arg0: i32, %arg1: i32, %arg2: memref<1x128x64xbf16, #tpu.memory_space<vmem>>, %arg3: memref<8x128xbf16, #tpu.memory_space<vmem>>, %arg4: memref<1x8x64xbf16, #tpu.memory_space<vmem>>, %arg5: memref<8x1xf32, #tpu.memory_space<vmem>>, %arg6: memref<8x1xf32, #tpu.memory_space<vmem>>) attributes {dimension_semantics = [#tpu.dimension_semantics<arbitrary>, #tpu.dimension_semantics<arbitrary>], iteration_bounds = array<i64: 2, 1>, scalar_prefetch = 0 : i64, scratch_operands = 0 : i64, tpu.core_type = #tpu.core_type<tc>, window_params = [{transform_indices = @transform_0, window_bounds = array<i64: 1, 128, 64>}, {pipeline_mode = #tpu.pipeline_mode<synchronous>, transform_indices = @transform_1, window_bounds = array<i64: 8, 128>}, {transform_indices = @transform_2, window_bounds = array<i64: 1, 8, 64>}, {pipeline_mode = #tpu.pipeline_mode<synchronous>, transform_indices = @transform_3, window_bounds = array<i64: 8, 1>}, {pipeline_mode = #tpu.pipeline_mode<synchronous>, transform_indices = @transform_4, window_bounds = array<i64: 8, 1>}]} {
    %c0_i32 = arith.constant 0 : i32
    %0 = arith.cmpi eq, %arg0, %c0_i32 : i32
    %c0_i32_0 = arith.constant 0 : i32
    %1 = arith.cmpi eq, %arg1, %c0_i32_0 : i32
    %2 = arith.andi %0, %1 : i1
    %3 = arith.extui %2 : i1 to i32
    %c0_i32_1 = arith.constant 0 : i32
    %4 = arith.cmpi ne, %3, %c0_i32_1 : i32
    scf.if %4 {
      %cst_19 = arith.constant 0.000000e+00 : f32
      %24 = vector.broadcast %cst_19 : f32 to vector<8x1xf32>
      %c0_20 = arith.constant 0 : index
      %c0_21 = arith.constant 0 : index
      %25 = vector.load %arg5[%c0_20, %c0_21] : memref<8x1xf32, #tpu.memory_space<vmem>>, vector<8x1xf32>
      tpu.vector_store %arg5[%c0_20, %c0_21], %24 {strides = array<i32>} : memref<8x1xf32, #tpu.memory_space<vmem>>, vector<8x1xf32>,
      %cst_22 = arith.constant 0.000000e+00 : f32
      %26 = vector.broadcast %cst_22 : f32 to vector<8x1xf32>
      %c0_23 = arith.constant 0 : index
      %c0_24 = arith.constant 0 : index
      %27 = vector.load %arg6[%c0_23, %c0_24] : memref<8x1xf32, #tpu.memory_space<vmem>>, vector<8x1xf32>
      tpu.vector_store %arg6[%c0_23, %c0_24], %26 {strides = array<i32>} : memref<8x1xf32, #tpu.memory_space<vmem>>, vector<8x1xf32>,
    } else {
    }
    %c0 = arith.constant 0 : index
    %c0_2 = arith.constant 0 : index
    %5 = vector.load %arg3[%c0, %c0_2] : memref<8x128xbf16, #tpu.memory_space<vmem>>, vector<8x128xbf16>
    %c0_3 = arith.constant 0 : index
    %c0_4 = arith.constant 0 : index
    %c0_5 = arith.constant 0 : index
    %6 = vector.load %arg2[%c0_3, %c0_4, %c0_5] : memref<1x128x64xbf16, #tpu.memory_space<vmem>>, vector<1x128x64xbf16>
    %7 = vector.shape_cast %6 : vector<1x128x64xbf16> to vector<128x64xbf16>
    %cst = arith.constant dense<0.000000e+00> : vector<8x64xf32>
    %8 = tpu.matmul %5, %7, %cst {dimension_numbers = #tpu.dot_dimension_numbers<[1], [0], [0], [1], [0, 0, 1, 1], [], []>} : vector<8x128xbf16>, vector<128x64xbf16>, vector<8x64xf32> -> vector<8x64xf32>
    %c0_6 = arith.constant 0 : index
    %c0_7 = arith.constant 0 : index
    %9 = vector.load %arg5[%c0_6, %c0_7] : memref<8x1xf32, #tpu.memory_space<vmem>>, vector<8x1xf32>
    %cst_8 = arith.constant dense<0.000000e+00> : vector<8xf32>
    %10 = vector.multi_reduction <add>, %8, %cst_8 [1] : vector<8x64xf32> to vector<8xf32>
    %11 = vector.shape_cast %10 : vector<8xf32> to vector<8x1xf32>
    %12 = arith.addf %9, %11 : vector<8x1xf32>
    %c0_9 = arith.constant 0 : index
    %c0_10 = arith.constant 0 : index
    %13 = vector.load %arg5[%c0_9, %c0_10] : memref<8x1xf32, #tpu.memory_space<vmem>>, vector<8x1xf32>
    tpu.vector_store %arg5[%c0_9, %c0_10], %12 {strides = array<i32>} : memref<8x1xf32, #tpu.memory_space<vmem>>, vector<8x1xf32>,
    %c0_11 = arith.constant 0 : index
    %c0_12 = arith.constant 0 : index
    %14 = vector.load %arg6[%c0_11, %c0_12] : memref<8x1xf32, #tpu.memory_space<vmem>>, vector<8x1xf32>
    %15 = arith.mulf %8, %8 : vector<8x64xf32>
    %cst_13 = arith.constant dense<0.000000e+00> : vector<8xf32>
    %16 = vector.multi_reduction <add>, %15, %cst_13 [1] : vector<8x64xf32> to vector<8xf32>
    %17 = vector.shape_cast %16 : vector<8xf32> to vector<8x1xf32>
    %18 = arith.addf %14, %17 : vector<8x1xf32>
    %c0_14 = arith.constant 0 : index
    %c0_15 = arith.constant 0 : index
    %19 = vector.load %arg6[%c0_14, %c0_15] : memref<8x1xf32, #tpu.memory_space<vmem>>, vector<8x1xf32>
    tpu.vector_store %arg6[%c0_14, %c0_15], %18 {strides = array<i32>} : memref<8x1xf32, #tpu.memory_space<vmem>>, vector<8x1xf32>,
    %20 = arith.truncf %8 : vector<8x64xf32> to vector<8x64xbf16>
    %c0_16 = arith.constant 0 : index
    %c0_17 = arith.constant 0 : index
    %c0_18 = arith.constant 0 : index
    %21 = vector.load %arg4[%c0_16, %c0_17, %c0_18] : memref<1x8x64xbf16, #tpu.memory_space<vmem>>, vector<1x8x64xbf16>
    %22 = vector.shape_cast %21 : vector<1x8x64xbf16> to vector<8x64xbf16>
    %23 = vector.shape_cast %20 : vector<8x64xbf16> to vector<1x8x64xbf16>
    tpu.vector_store %arg4[%c0_16, %c0_17, %c0_18], %23 {strides = array<i32>} : memref<1x8x64xbf16, #tpu.memory_space<vmem>>, vector<1x8x64xbf16>,
    return
  }
  func.func @transform_0(%arg0: i32, %arg1: i32) -> (i32, i32, i32) {
    %c0_i32 = arith.constant 0 : i32
    %c0_i32_0 = arith.constant 0 : i32
    return %arg0, %c0_i32, %arg1 : i32, i32, i32
  }
  func.func @transform_1(%arg0: i32, %arg1: i32) -> (i32, i32) {
    %c0_i32 = arith.constant 0 : i32
    %c0_i32_0 = arith.constant 0 : i32
    %c0_i32_1 = arith.constant 0 : i32
    return %c0_i32, %c0_i32_0 : i32, i32
  }
  func.func @transform_2(%arg0: i32, %arg1: i32) -> (i32, i32, i32) {
    %c0_i32 = arith.constant 0 : i32
    %c0_i32_0 = arith.constant 0 : i32
    return %arg0, %c0_i32, %arg1 : i32, i32, i32
  }
  func.func @transform_3(%arg0: i32, %arg1: i32) -> (i32, i32) {
    %c0_i32 = arith.constant 0 : i32
    %c0_i32_0 = arith.constant 0 : i32
    %c0_i32_1 = arith.constant 0 : i32
    return %c0_i32, %c0_i32_0 : i32, i32
  }
  func.func @transform_4(%arg0: i32, %arg1: i32) -> (i32, i32) {
    %c0_i32 = arith.constant 0 : i32
    %c0_i32_0 = arith.constant 0 : i32
    %c0_i32_1 = arith.constant 0 : i32
    return %c0_i32, %c0_i32_0 : i32, i32
  }
}

module attributes {stable_mosaic.version = 11 : i64} {
  func.func @bn_act_kernel(%arg0: i32, %arg1: i32, %arg2: memref<1x8x64xbf16, #tpu.memory_space<vmem>>, %arg3: memref<1x8x1xf32, #tpu.memory_space<vmem>>, %arg4: memref<1x8x1xf32, #tpu.memory_space<vmem>>, %arg5: memref<1x8x64xf32, #tpu.memory_space<vmem>>) attributes {dimension_semantics = [#tpu.dimension_semantics<parallel>, #tpu.dimension_semantics<parallel>], iteration_bounds = array<i64: 2, 1>, scalar_prefetch = 0 : i64, scratch_operands = 0 : i64, tpu.core_type = #tpu.core_type<tc>, window_params = [{transform_indices = @transform_0, window_bounds = array<i64: 1, 8, 64>}, {transform_indices = @transform_1, window_bounds = array<i64: 1, 8, 1>}, {transform_indices = @transform_2, window_bounds = array<i64: 1, 8, 1>}, {transform_indices = @transform_3, window_bounds = array<i64: 1, 8, 64>}]} {
    %c0 = arith.constant 0 : index
    %c0_0 = arith.constant 0 : index
    %c0_1 = arith.constant 0 : index
    %0 = vector.load %arg2[%c0, %c0_0, %c0_1] : memref<1x8x64xbf16, #tpu.memory_space<vmem>>, vector<1x8x64xbf16>
    %1 = vector.shape_cast %0 : vector<1x8x64xbf16> to vector<8x64xbf16>
    %2 = arith.extf %1 : vector<8x64xbf16> to vector<8x64xf32>
    %c0_2 = arith.constant 0 : index
    %c0_3 = arith.constant 0 : index
    %c0_4 = arith.constant 0 : index
    %3 = vector.load %arg3[%c0_2, %c0_3, %c0_4] : memref<1x8x1xf32, #tpu.memory_space<vmem>>, vector<1x8x1xf32>
    %4 = vector.shape_cast %3 : vector<1x8x1xf32> to vector<8x1xf32>
    %5 = vector.broadcast %4 : vector<8x1xf32> to vector<8x64xf32>
    %6 = arith.mulf %2, %5 : vector<8x64xf32>
    %c0_5 = arith.constant 0 : index
    %c0_6 = arith.constant 0 : index
    %c0_7 = arith.constant 0 : index
    %7 = vector.load %arg4[%c0_5, %c0_6, %c0_7] : memref<1x8x1xf32, #tpu.memory_space<vmem>>, vector<1x8x1xf32>
    %8 = vector.shape_cast %7 : vector<1x8x1xf32> to vector<8x1xf32>
    %9 = vector.broadcast %8 : vector<8x1xf32> to vector<8x64xf32>
    %10 = arith.addf %6, %9 : vector<8x64xf32>
    %cst = arith.constant 0.000000e+00 : f32
    %11 = vector.broadcast %cst : f32 to vector<8x64xf32>
    %12 = arith.cmpf oge, %10, %11 : vector<8x64xf32>
    %cst_8 = arith.constant 2.000000e-01 : f32
    %13 = vector.broadcast %cst_8 : f32 to vector<8x64xf32>
    %14 = arith.mulf %13, %10 : vector<8x64xf32>
    %15 = arith.select %12, %10, %14 : vector<8x64xi1>, vector<8x64xf32>
    %c0_9 = arith.constant 0 : index
    %c0_10 = arith.constant 0 : index
    %c0_11 = arith.constant 0 : index
    %16 = vector.load %arg5[%c0_9, %c0_10, %c0_11] : memref<1x8x64xf32, #tpu.memory_space<vmem>>, vector<1x8x64xf32>
    %17 = vector.shape_cast %16 : vector<1x8x64xf32> to vector<8x64xf32>
    %18 = vector.shape_cast %15 : vector<8x64xf32> to vector<1x8x64xf32>
    tpu.vector_store %arg5[%c0_9, %c0_10, %c0_11], %18 {strides = array<i32>} : memref<1x8x64xf32, #tpu.memory_space<vmem>>, vector<1x8x64xf32>,
    return
  }
  func.func @transform_0(%arg0: i32, %arg1: i32) -> (i32, i32, i32) {
    %c0_i32 = arith.constant 0 : i32
    %c0_i32_0 = arith.constant 0 : i32
    return %arg0, %c0_i32, %arg1 : i32, i32, i32
  }
  func.func @transform_1(%arg0: i32, %arg1: i32) -> (i32, i32, i32) {
    %c0_i32 = arith.constant 0 : i32
    %c0_i32_0 = arith.constant 0 : i32
    %c0_i32_1 = arith.constant 0 : i32
    return %arg0, %c0_i32, %c0_i32_0 : i32, i32, i32
  }
  func.func @transform_2(%arg0: i32, %arg1: i32) -> (i32, i32, i32) {
    %c0_i32 = arith.constant 0 : i32
    %c0_i32_0 = arith.constant 0 : i32
    %c0_i32_1 = arith.constant 0 : i32
    return %arg0, %c0_i32, %c0_i32_0 : i32, i32, i32
  }
  func.func @transform_3(%arg0: i32, %arg1: i32) -> (i32, i32, i32) {
    %c0_i32 = arith.constant 0 : i32
    %c0_i32_0 = arith.constant 0 : i32
    return %arg0, %c0_i32, %arg1 : i32, i32, i32
  }
}

</mosaic_0001>

<llo_original>
// kernel: convolutional_block.3
$region0: #{convolutional_block.3}
  #allocation0 [shape = 'u32[]', space=smem, size = 0x4, offset = 0x4, fixed_abs, tag = 'smem constant byte address 0x4 - core index']
  #allocation1 [shape = 'u32[144,128]{1,0:T(1,128)}', space=vmem, size = 0x12000, scoped, tag = 'internal scratch']
  %s0 = inlined_call_operand.vmem [shape: bf16[2,8,64], index: 0, kind: input, shape index: {}]
  %s1 = inlined_call_operand.vmem [shape: f32[2,8,1], index: 1, kind: input, shape index: {}]
  %s2 = inlined_call_operand.vmem [shape: f32[2,8,1], index: 2, kind: input, shape index: {}]
  %s3 = inlined_call_operand.vmem [shape: f32[2,8,64], index: 3, kind: output, shape index: {}]
  %s4 = sld [smem:[#allocation0]]
  $region45: #{convolutional_block.3} parent=0
    _
  %s6 = ssub.s32 1, %s4
  %s7 = scalar_select 0, %s6, %s4
  loop: start=0, step=1, limit=4
  $region2: #{convolutional_block.3} parent=0 // loop_pre_header
    _
  $region3: #{convolutional_block.3} parent=0 // loop_header
    %s9 = sphi 0, %s13
    %p10 = scmp.ge.s32.totalorder %s9, 4
    %s16 = sphi 0, %s28
    %s17 = sphi 0, %s24
    %s18 = sphi 0, %s16
    %s19 = sphi 0, %s17
    %s20 = sphi 0, %s18
    %s21 = sphi 0, %s19
    %s33 = sphi 0, %s35
    %s36 = sphi 0, %s33
    %s37 = sphi 0, %s36
    %s53 = sphi 0, %s37
    %s59 = sphi 0, %s61
    %s62 = sphi 0, %s59
    %s63 = sphi 0, %s62
    %s79 = sphi 0, %s63
    %s85 = sphi 0, %s87
    %s88 = sphi 0, %s85
    %s89 = sphi 0, %s88
    %s105 = sphi 0, %s89
    %s113 = sphi 0, %s115
    %s116 = sphi 0, %s113
    %s117 = sphi 0, %s116
    %s133 = sphi 0, %s117
  $region4: #{convolutional_block.3} parent=0 // loop_header_branch
    %12 = sbr.rel (%p10) target = $region8
  $region5: #{convolutional_block.3} parent=0 // loop_body
    %s14 = ssub.s32 %s9, 1
    %s15 = ssub.s32 %s9, 2
    %s22 = sadd.s32 1, %s17
    %p23 = scmp.ge.s32.totalorder %s22, 1
    %s24 = scalar_select %p23, 0, %s22
    %s25 = sadd.s32 1, %s16
    %s26 = scalar_select %p23, %s25, %s16
    %p27 = scmp.ge.s32.totalorder %s26, 2
    %s28 = scalar_select %p27, 0, %s26
    %s29 = ssub.s32 %s16, %s28
    %s30 = ssub.s32 %s17, %s24
    %s31 = sor.u32 %s29, %s30
    %p32 = scmp.eq.s32.totalorder %s31, 0
    %s34 = sadd.s32 %s33, 1
    %s35 = scalar_select %p32, %s33, %s34
    %p38 = pneg %p32
    %p39 = scmp.eq.s32.totalorder %s9, 1
    %p40 = por %p38, %p39
    %p41 = scmp.ne.s32.totalorder %s33, %s36
    %p42 = scmp.eq.s32.totalorder %s9, 0
    %p43 = por %p41, %p42
    %p44 = scmp.ne.s32.totalorder %s33, %s36
    %p45 = scmp.eq.s32.totalorder %s14, 1
    %p46 = por %p44, %p45
    %p47 = scmp.ne.s32.totalorder %s36, %s37
    %p48 = scmp.eq.s32.totalorder %s14, 0
    %p49 = por %p47, %p48
    %p50 = scmp.ne.s32.totalorder %s36, %s37
    %p51 = scmp.eq.s32.totalorder %s15, 1
    %p52 = por %p50, %p51
    %p54 = scmp.ne.s32.totalorder %s37, %s53
    %p55 = scmp.eq.s32.totalorder %s15, 0
    %p56 = por %p54, %p55
    %s57 = ssub.s32 %s16, %s28
    %p58 = scmp.eq.s32.totalorder %s57, 0
    %s60 = sadd.s32 %s59, 1
    %s61 = scalar_select %p58, %s59, %s60
    %p64 = pneg %p58
    %p65 = scmp.eq.s32.totalorder %s9, 1
    %p66 = por %p64, %p65
    %p67 = scmp.ne.s32.totalorder %s59, %s62
    %p68 = scmp.eq.s32.totalorder %s9, 0
    %p69 = por %p67, %p68
    %p70 = scmp.ne.s32.totalorder %s59, %s62
    %p71 = scmp.eq.s32.totalorder %s14, 1
    %p72 = por %p70, %p71
    %p73 = scmp.ne.s32.totalorder %s62, %s63
    %p74 = scmp.eq.s32.totalorder %s14, 0
    %p75 = por %p73, %p74
    %p76 = scmp.ne.s32.totalorder %s62, %s63
    %p77 = scmp.eq.s32.totalorder %s15, 1
    %p78 = por %p76, %p77
    %p80 = scmp.ne.s32.totalorder %s63, %s79
    %p81 = scmp.eq.s32.totalorder %s15, 0
    %p82 = por %p80, %p81
    %s83 = ssub.s32 %s16, %s28
    %p84 = scmp.eq.s32.totalorder %s83, 0
    %s86 = sadd.s32 %s85, 1
    %s87 = scalar_select %p84, %s85, %s86
    %p90 = pneg %p84
    %p91 = scmp.eq.s32.totalorder %s9, 1
    %p92 = por %p90, %p91
    %p93 = scmp.ne.s32.totalorder %s85, %s88
    %p94 = scmp.eq.s32.totalorder %s9, 0
    %p95 = por %p93, %p94
    %p96 = scmp.ne.s32.totalorder %s85, %s88
    %p97 = scmp.eq.s32.totalorder %s14, 1
    %p98 = por %p96, %p97
    %p99 = scmp.ne.s32.totalorder %s88, %s89
    %p100 = scmp.eq.s32.totalorder %s14, 0
    %p101 = por %p99, %p100
    %p102 = scmp.ne.s32.totalorder %s88, %s89
    %p103 = scmp.eq.s32.totalorder %s15, 1
    %p104 = por %p102, %p103
    %p106 = scmp.ne.s32.totalorder %s89, %s105
    %p107 = scmp.eq.s32.totalorder %s15, 0
    %p108 = por %p106, %p107
    %s109 = ssub.s32 %s16, %s28
    %s110 = ssub.s32 %s17, %s24
    %s111 = sor.u32 %s109, %s110
    %p112 = scmp.eq.s32.totalorder %s111, 0
    %s114 = sadd.s32 %s113, 1
    %s115 = scalar_select %p112, %s113, %s114
    %p118 = pneg %p112
    %p119 = scmp.eq.s32.totalorder %s9, 1
    %p120 = por %p118, %p119
    %p121 = scmp.ne.s32.totalorder %s113, %s116
    %p122 = scmp.eq.s32.totalorder %s9, 0
    %p123 = por %p121, %p122
    %p124 = scmp.ne.s32.totalorder %s113, %s116
    %p125 = scmp.eq.s32.totalorder %s14, 1
    %p126 = por %p124, %p125
    %p127 = scmp.ne.s32.totalorder %s116, %s117
    %p128 = scmp.eq.s32.totalorder %s14, 0
    %p129 = por %p127, %p128
    %p130 = scmp.ne.s32.totalorder %s116, %s117
    %p131 = scmp.eq.s32.totalorder %s15, 1
    %p132 = por %p130, %p131
    %p134 = scmp.ne.s32.totalorder %s117, %s133
    %p135 = scmp.eq.s32.totalorder %s15, 0
    %p136 = por %p134, %p135
    %p137 = scmp.le.s32.totalorder 1, %s9
    %p138 = scmp.lt.s32.totalorder %s9, 3
    %p139 = pnand %p137, %p138
    %p140 = pneg %p139
    // Predicated region
    $region9: #{convolutional_block.3} parent=5 // pred_check
      _
    $region10: #{convolutional_block.3} parent=5 // pred_check_branch
      %142 = sbr.rel (%p139) target = $region12
    $region11: #{convolutional_block.3} parent=5 // pred_region
      %s143 = ssub.s32 %s9, 1
    $region12: #{convolutional_block.3} parent=5 // pred_fallthru
      _
    %p144 = scmp.lt.s32.totalorder %s9, 2
    // Predicated region
    $region13: #{convolutional_block.3} parent=5 // pred_check
      %p145 = pneg %p144
    $region14: #{convolutional_block.3} parent=5 // pred_check_branch
      %147 = sbr.rel (%p145) target = $region16
    $region15: #{convolutional_block.3} parent=5 // pred_region
      // Predicated region
      $region17: #{convolutional_block.3} parent=15 // pred_check
        %p148 = pneg %p43
      $region18: #{convolutional_block.3} parent=15 // pred_check_branch
        %150 = sbr.rel (%p148) target = $region20
      $region19: #{convolutional_block.3} parent=15 // pred_region
        %p151 = scmp.lt.s32.totalorder %s16, 1
        %s152 = scalar_select %p151, %s16, 1
        %p153 = scmp.lt.s32.totalorder %s17, 0
        %s154 = scalar_select %p153, %s17, 0
        %s155 = sadd.s32 %s154, %s152
        %s156 = smul.addr %s155, 4
        %s157 = scalar_lea.vmem %s0, %s156
      $region20: #{convolutional_block.3} parent=15 // pred_fallthru
        _
      // Predicated region
      $region21: #{convolutional_block.3} parent=15 // pred_check
        %p158 = pneg %p69
      $region22: #{convolutional_block.3} parent=15 // pred_check_branch
        %160 = sbr.rel (%p158) target = $region24
      $region23: #{convolutional_block.3} parent=15 // pred_region
        %p161 = scmp.lt.s32.totalorder %s16, 1
        %s162 = scalar_select %p161, %s16, 1
        %s163 = smul.addr %s162, 8
        %s164 = scalar_lea.vmem %s1, %s163
      $region24: #{convolutional_block.3} parent=15 // pred_fallthru
        _
      // Predicated region
      $region25: #{convolutional_block.3} parent=15 // pred_check
        %p165 = pneg %p95
      $region26: #{convolutional_block.3} parent=15 // pred_check_branch
        %167 = sbr.rel (%p165) target = $region28
      $region27: #{convolutional_block.3} parent=15 // pred_region
        %p168 = scmp.lt.s32.totalorder %s16, 1
        %s169 = scalar_select %p168, %s16, 1
        %s170 = smul.addr %s169, 8
        %s171 = scalar_lea.vmem %s2, %s170
      $region28: #{convolutional_block.3} parent=15 // pred_fallthru
        _
    $region16: #{convolutional_block.3} parent=5 // pred_fallthru
      _
    %p172 = scmp.le.s32.totalorder 1, %s9
    %p173 = scmp.lt.s32.totalorder %s9, 3
    %p174 = pnand %p172, %p173
    %p175 = pneg %p174
    // Predicated region
    $region29: #{convolutional_block.3} parent=5 // pred_check
      _
    $region30: #{convolutional_block.3} parent=5 // pred_check_branch
      %177 = sbr.rel (%p174) target = $region32
    $region31: #{convolutional_block.3} parent=5 // pred_region
      %s178 = ssub.s32 %s9, 1
      %p179 = scmp.lt.s32.totalorder %s18, 1
      %s180 = scalar_select %p179, %s18, 1
      %p181 = scmp.lt.s32.totalorder %s19, 0
      %s182 = scalar_select %p181, %s19, 0
      %s183 = sadd.s32 %s182, %s180
      %s184 = smul.addr %s183, 4
      %s185 = scalar_lea.vmem %s0, %s184
      %p186 = pneg %p49
      %p187 = pneg %p46
      %p188 = scmp.lt.s32.totalorder %s18, 1
      %s189 = scalar_select %p188, %s18, 1
      %s190 = smul.addr %s189, 8
      %s191 = scalar_lea.vmem %s1, %s190
      %p192 = pneg %p75
      %p193 = pneg %p72
      %p194 = scmp.lt.s32.totalorder %s18, 1
      %s195 = scalar_select %p194, %s18, 1
      %s196 = smul.addr %s195, 8
      %s197 = scalar_lea.vmem %s2, %s196
      %p198 = pneg %p101
      %p199 = pneg %p98
      %p200 = pneg %p129
      %p201 = pneg %p126
      %p202 = scmp.lt.s32.totalorder %s18, 1
      %s203 = scalar_select %p202, %s18, 1
      %p204 = scmp.lt.s32.totalorder %s19, 0
      %s205 = scalar_select %p204, %s19, 0
      %s206 = sadd.s32 %s205, %s203
      %s207 = smul.addr %s206, 8
      %s208 = scalar_lea.vmem %s3, %s207
      %p209 = scmp.lt.s32.totalorder %s18, 1
      %s210 = scalar_select %p209, %s18, 1
      %p211 = scmp.lt.s32.totalorder %s19, 0
      %s212 = scalar_select %p211, %s19, 0
      %s213 = sadd.s32 %s212, %s210
      %s214 = smul.addr %s213, 4
      %s215 = scalar_lea.vmem %s0, %s214
      %p216 = scmp.lt.s32.totalorder %s18, 1
      %s217 = scalar_select %p216, %s18, 1
      %s218 = smul.addr %s217, 8
      %s219 = scalar_lea.vmem %s1, %s218
      %p220 = scmp.lt.s32.totalorder %s18, 1
      %s221 = scalar_select %p220, %s18, 1
      %s222 = smul.addr %s221, 8
      %s223 = scalar_lea.vmem %s2, %s222
      %p224 = scmp.lt.s32.totalorder %s18, 1
      %s225 = scalar_select %p224, %s18, 1
      %p226 = scmp.lt.s32.totalorder %s19, 0
      %s227 = scalar_select %p226, %s19, 0
      %s228 = sadd.s32 %s227, %s225
      %s229 = smul.addr %s228, 8
      %s230 = scalar_lea.vmem %s3, %s229
      %v231 = vld [vmem:[%s215] sm:$0xf]
      %v232 = vunpack.c.l.bf16 %v231
      %v233 = vld [vmem:[%s219] sm:$0xff]
      %235 = vset.pattern.permute.xlu0 0
      %236 = vperm.xlu0 %235, %v233
      %v237 = vpop.permute.xlu0 %236
      %v239 = vmul.f32 %v232, %v237
      %v240 = vld [vmem:[%s223] sm:$0xff]
      %242 = vset.pattern.permute.xlu0 0
      %243 = vperm.xlu0 %242, %v240
      %v244 = vpop.permute.xlu0 %243
      %v246 = vadd.f32 %v239, %v244
      %vm247 = vcmp.ge.f32.partialorder %v246, 0.0
      %v248 = vmul.f32 %v246, 0.2
      %v249 = vsel %vm247, %v246, %v248
      %vm250 = vcmask 523264
      %251 = vst.msk [vmem:[%s230] sm:$0xff] %vm250, %v249
      %p252 = scmp.lt.s32.totalorder %s18, 1
      %s253 = scalar_select %p252, %s18, 1
      %p254 = scmp.lt.s32.totalorder %s19, 0
      %s255 = scalar_select %p254, %s19, 0
      %s256 = sadd.s32 %s255, %s253
      %s257 = smul.addr %s256, 8
      %s258 = scalar_lea.vmem %s3, %s257
      // Predicated region
      $region33: #{convolutional_block.3} parent=31 // pred_check
        %p259 = pneg %p126
      $region34: #{convolutional_block.3} parent=31 // pred_check_branch
        %261 = sbr.rel (%p259) target = $region36
      $region35: #{convolutional_block.3} parent=31 // pred_region
        _
      $region36: #{convolutional_block.3} parent=31 // pred_fallthru
        _
    $region32: #{convolutional_block.3} parent=5 // pred_fallthru
      _
    %p262 = scmp.le.s32.totalorder 2, %s9
    // Predicated region
    $region37: #{convolutional_block.3} parent=5 // pred_check
      %p263 = pneg %p262
    $region38: #{convolutional_block.3} parent=5 // pred_check_branch
      %265 = sbr.rel (%p263) target = $region40
    $region39: #{convolutional_block.3} parent=5 // pred_region
      %s266 = ssub.s32 %s9, 2
      // Predicated region
      $region41: #{convolutional_block.3} parent=39 // pred_check
        %p267 = pneg %p132
      $region42: #{convolutional_block.3} parent=39 // pred_check_branch
        %269 = sbr.rel (%p267) target = $region44
      $region43: #{convolutional_block.3} parent=39 // pred_region
        %p270 = scmp.lt.s32.totalorder %s20, 1
        %s271 = scalar_select %p270, %s20, 1
        %p272 = scmp.lt.s32.totalorder %s21, 0
        %s273 = scalar_select %p272, %s21, 0
        %s274 = sadd.s32 %s273, %s271
        %s275 = smul.addr %s274, 8
        %s276 = scalar_lea.vmem %s3, %s275
      $region44: #{convolutional_block.3} parent=39 // pred_fallthru
        _
    $region40: #{convolutional_block.3} parent=5 // pred_fallthru
      _
  $region6: #{convolutional_block.3} parent=0 // loop_footer
    %s13 = sadd.s32 1, %s9
  $region7: #{convolutional_block.3} parent=0 // loop_footer_branch
    %8 = sbr.rel target = $region3
  $region8: #{convolutional_block.3} parent=0 // loop_exit
    _

// kernel: convolutional_block.2
$region0: #{convolutional_block.2}
  #allocation0 [shape = 'u32[]', space=smem, size = 0x4, offset = 0x4, fixed_abs, tag = 'smem constant byte address 0x4 - core index']
  #allocation1 [shape = 'u32[144,128]{1,0:T(1,128)}', space=vmem, size = 0x12000, scoped, tag = 'internal scratch']
  %s0 = inlined_call_operand.vmem [shape: bf16[2,128,64], index: 0, kind: input, shape index: {}]
  %s1 = inlined_call_operand.vmem [shape: bf16[8,128], index: 1, kind: input, shape index: {}]
  %s2 = inlined_call_operand.vmem [shape: bf16[2,8,64], index: 2, kind: output, shape index: {0}]
  %s3 = inlined_call_operand.vmem [shape: f32[8,1], index: 3, kind: output, shape index: {1}]
  %s4 = inlined_call_operand.vmem [shape: f32[8,1], index: 4, kind: output, shape index: {2}]
  %5 = xla_tuple %s2, %s3, %s4
  %s6 = sld [smem:[#allocation0]]
  $region61: #{convolutional_block.2} parent=0
    _
  %s8 = ssub.s32 1, %s6
  %s9 = scalar_select 0, %s8, %s6
  loop: start=0, step=1, limit=4
  $region2: #{convolutional_block.2} parent=0 // loop_pre_header
    _
  $region3: #{convolutional_block.2} parent=0 // loop_header
    %s11 = sphi 0, %s15
    %p12 = scmp.ge.s32.totalorder %s11, 4
    %s18 = sphi 0, %s30
    %s19 = sphi 0, %s26
    %s20 = sphi 0, %s18
    %s21 = sphi 0, %s19
    %s22 = sphi 0, %s20
    %s23 = sphi 0, %s21
    %s35 = sphi 0, %s37
    %s38 = sphi 0, %s35
    %s39 = sphi 0, %s38
    %s55 = sphi 0, %s39
    %s59 = sphi 0, %s59
    %s61 = sphi 0, %s59
    %s62 = sphi 0, %s61
    %s76 = sphi 0, %s62
    %s84 = sphi 0, %s86
    %s87 = sphi 0, %s84
    %s88 = sphi 0, %s87
    %s104 = sphi 0, %s88
    %s108 = sphi 0, %s108
    %s110 = sphi 0, %s108
    %s111 = sphi 0, %s110
    %s125 = sphi 0, %s111
    %s129 = sphi 0, %s129
    %s131 = sphi 0, %s129
    %s132 = sphi 0, %s131
    %s146 = sphi 0, %s132
  $region4: #{convolutional_block.2} parent=0 // loop_header_branch
    %14 = sbr.rel (%p12) target = $region8
  $region5: #{convolutional_block.2} parent=0 // loop_body
    %s16 = ssub.s32 %s11, 1
    %s17 = ssub.s32 %s11, 2
    %s24 = sadd.s32 1, %s19
    %p25 = scmp.ge.s32.totalorder %s24, 1
    %s26 = scalar_select %p25, 0, %s24
    %s27 = sadd.s32 1, %s18
    %s28 = scalar_select %p25, %s27, %s18
    %p29 = scmp.ge.s32.totalorder %s28, 2
    %s30 = scalar_select %p29, 0, %s28
    %s31 = ssub.s32 %s18, %s30
    %s32 = ssub.s32 %s19, %s26
    %s33 = sor.u32 %s31, %s32
    %p34 = scmp.eq.s32.totalorder %s33, 0
    %s36 = sadd.s32 %s35, 1
    %s37 = scalar_select %p34, %s35, %s36
    %p40 = pneg %p34
    %p41 = scmp.eq.s32.totalorder %s11, 1
    %p42 = por %p40, %p41
    %p43 = scmp.ne.s32.totalorder %s35, %s38
    %p44 = scmp.eq.s32.totalorder %s11, 0
    %p45 = por %p43, %p44
    %p46 = scmp.ne.s32.totalorder %s35, %s38
    %p47 = scmp.eq.s32.totalorder %s16, 1
    %p48 = por %p46, %p47
    %p49 = scmp.ne.s32.totalorder %s38, %s39
    %p50 = scmp.eq.s32.totalorder %s16, 0
    %p51 = por %p49, %p50
    %p52 = scmp.ne.s32.totalorder %s38, %s39
    %p53 = scmp.eq.s32.totalorder %s17, 1
    %p54 = por %p52, %p53
    %p56 = scmp.ne.s32.totalorder %s39, %s55
    %p57 = scmp.eq.s32.totalorder %s17, 0
    %p58 = por %p56, %p57
    %s60 = sadd.s32 %s59, 1
    %p63 = scmp.eq.s32.totalorder %s11, 1
    %p64 = scmp.ne.s32.totalorder %s59, %s61
    %p65 = scmp.eq.s32.totalorder %s11, 0
    %p66 = por %p64, %p65
    %p67 = scmp.ne.s32.totalorder %s59, %s61
    %p68 = scmp.eq.s32.totalorder %s16, 1
    %p69 = por %p67, %p68
    %p70 = scmp.ne.s32.totalorder %s61, %s62
    %p71 = scmp.eq.s32.totalorder %s16, 0
    %p72 = por %p70, %p71
    %p73 = scmp.ne.s32.totalorder %s61, %s62
    %p74 = scmp.eq.s32.totalorder %s17, 1
    %p75 = por %p73, %p74
    %p77 = scmp.ne.s32.totalorder %s62, %s76
    %p78 = scmp.eq.s32.totalorder %s17, 0
    %p79 = por %p77, %p78
    %s80 = ssub.s32 %s18, %s30
    %s81 = ssub.s32 %s19, %s26
    %s82 = sor.u32 %s80, %s81
    %p83 = scmp.eq.s32.totalorder %s82, 0
    %s85 = sadd.s32 %s84, 1
    %s86 = scalar_select %p83, %s84, %s85
    %p89 = pneg %p83
    %p90 = scmp.eq.s32.totalorder %s11, 1
    %p91 = por %p89, %p90
    %p92 = scmp.ne.s32.totalorder %s84, %s87
    %p93 = scmp.eq.s32.totalorder %s11, 0
    %p94 = por %p92, %p93
    %p95 = scmp.ne.s32.totalorder %s84, %s87
    %p96 = scmp.eq.s32.totalorder %s16, 1
    %p97 = por %p95, %p96
    %p98 = scmp.ne.s32.totalorder %s87, %s88
    %p99 = scmp.eq.s32.totalorder %s16, 0
    %p100 = por %p98, %p99
    %p101 = scmp.ne.s32.totalorder %s87, %s88
    %p102 = scmp.eq.s32.totalorder %s17, 1
    %p103 = por %p101, %p102
    %p105 = scmp.ne.s32.totalorder %s88, %s104
    %p106 = scmp.eq.s32.totalorder %s17, 0
    %p107 = por %p105, %p106
    %s109 = sadd.s32 %s108, 1
    %p112 = scmp.eq.s32.totalorder %s11, 1
    %p113 = scmp.ne.s32.totalorder %s108, %s110
    %p114 = scmp.eq.s32.totalorder %s11, 0
    %p115 = por %p113, %p114
    %p116 = scmp.ne.s32.totalorder %s108, %s110
    %p117 = scmp.eq.s32.totalorder %s16, 1
    %p118 = por %p116, %p117
    %p119 = scmp.ne.s32.totalorder %s110, %s111
    %p120 = scmp.eq.s32.totalorder %s16, 0
    %p121 = por %p119, %p120
    %p122 = scmp.ne.s32.totalorder %s110, %s111
    %p123 = scmp.eq.s32.totalorder %s17, 1
    %p124 = por %p122, %p123
    %p126 = scmp.ne.s32.totalorder %s111, %s125
    %p127 = scmp.eq.s32.totalorder %s17, 0
    %p128 = por %p126, %p127
    %s130 = sadd.s32 %s129, 1
    %p133 = scmp.eq.s32.totalorder %s11, 1
    %p134 = scmp.ne.s32.totalorder %s129, %s131
    %p135 = scmp.eq.s32.totalorder %s11, 0
    %p136 = por %p134, %p135
    %p137 = scmp.ne.s32.totalorder %s129, %s131
    %p138 = scmp.eq.s32.totalorder %s16, 1
    %p139 = por %p137, %p138
    %p140 = scmp.ne.s32.totalorder %s131, %s132
    %p141 = scmp.eq.s32.totalorder %s16, 0
    %p142 = por %p140, %p141
    %p143 = scmp.ne.s32.totalorder %s131, %s132
    %p144 = scmp.eq.s32.totalorder %s17, 1
    %p145 = por %p143, %p144
    %p147 = scmp.ne.s32.totalorder %s132, %s146
    %p148 = scmp.eq.s32.totalorder %s17, 0
    %p149 = por %p147, %p148
    %p150 = scmp.le.s32.totalorder 1, %s11
    %p151 = scmp.lt.s32.totalorder %s11, 3
    %p152 = pnand %p150, %p151
    %p153 = pneg %p152
    // Predicated region
    $region9: #{convolutional_block.2} parent=5 // pred_check
      _
    $region10: #{convolutional_block.2} parent=5 // pred_check_branch
      %155 = sbr.rel (%p152) target = $region12
    $region11: #{convolutional_block.2} parent=5 // pred_region
      %s156 = ssub.s32 %s11, 1
      // Predicated region
      $region13: #{convolutional_block.2} parent=11 // pred_check
        %p157 = pneg %p72
      $region14: #{convolutional_block.2} parent=11 // pred_check_branch
        %159 = sbr.rel (%p157) target = $region16
      $region15: #{convolutional_block.2} parent=11 // pred_region
        _
      $region16: #{convolutional_block.2} parent=11 // pred_fallthru
        _
    $region12: #{convolutional_block.2} parent=5 // pred_fallthru
      _
    %p160 = scmp.lt.s32.totalorder %s11, 2
    // Predicated region
    $region17: #{convolutional_block.2} parent=5 // pred_check
      %p161 = pneg %p160
    $region18: #{convolutional_block.2} parent=5 // pred_check_branch
      %163 = sbr.rel (%p161) target = $region20
    $region19: #{convolutional_block.2} parent=5 // pred_region
      // Predicated region
      $region21: #{convolutional_block.2} parent=19 // pred_check
        %p164 = pneg %p45
      $region22: #{convolutional_block.2} parent=19 // pred_check_branch
        %166 = sbr.rel (%p164) target = $region24
      $region23: #{convolutional_block.2} parent=19 // pred_region
        %p167 = scmp.lt.s32.totalorder %s18, 1
        %s168 = scalar_select %p167, %s18, 1
        %p169 = scmp.lt.s32.totalorder %s19, 0
        %s170 = scalar_select %p169, %s19, 0
        %s171 = smul.addr %s168, 16
        %s172 = sadd.s32 %s170, %s171
        %s173 = smul.addr %s172, 4
        %s174 = scalar_lea.vmem %s0, %s173
      $region24: #{convolutional_block.2} parent=19 // pred_fallthru
        _
    $region20: #{convolutional_block.2} parent=5 // pred_fallthru
      _
    %p175 = scmp.le.s32.totalorder 1, %s11
    %p176 = scmp.lt.s32.totalorder %s11, 3
    %p177 = pnand %p175, %p176
    %p178 = pneg %p177
    // Predicated region
    $region25: #{convolutional_block.2} parent=5 // pred_check
      _
    $region26: #{convolutional_block.2} parent=5 // pred_check_branch
      %180 = sbr.rel (%p177) target = $region28
    $region27: #{convolutional_block.2} parent=5 // pred_region
      %s181 = ssub.s32 %s11, 1
      %p182 = scmp.lt.s32.totalorder %s20, 1
      %s183 = scalar_select %p182, %s20, 1
      %p184 = scmp.lt.s32.totalorder %s21, 0
      %s185 = scalar_select %p184, %s21, 0
      %s186 = smul.addr %s183, 16
      %s187 = sadd.s32 %s185, %s186
      %s188 = smul.addr %s187, 4
      %s189 = scalar_lea.vmem %s0, %s188
      %p190 = pneg %p51
      %p191 = pneg %p48
      %p192 = pneg %p72
      %p193 = pneg %p69
      %p194 = pneg %p100
      %p195 = pneg %p97
      %p196 = scmp.lt.s32.totalorder %s20, 1
      %s197 = scalar_select %p196, %s20, 1
      %p198 = scmp.lt.s32.totalorder %s21, 0
      %s199 = scalar_select %p198, %s21, 0
      %s200 = sadd.s32 %s199, %s197
      %s201 = smul.addr %s200, 4
      %s202 = scalar_lea.vmem %s2, %s201
      %p203 = pneg %p121
      %p204 = pneg %p118
      %p205 = pneg %p142
      %p206 = pneg %p139
      %p207 = scmp.lt.s32.totalorder %s20, 1
      %s208 = scalar_select %p207, %s20, 1
      %p209 = scmp.lt.s32.totalorder %s21, 0
      %s210 = scalar_select %p209, %s21, 0
      %s211 = smul.addr %s208, 16
      %s212 = sadd.s32 %s210, %s211
      %s213 = smul.addr %s212, 4
      %s214 = scalar_lea.vmem %s0, %s213
      %p215 = scmp.lt.s32.totalorder %s20, 1
      %s216 = scalar_select %p215, %s20, 1
      %p217 = scmp.lt.s32.totalorder %s21, 0
      %s218 = scalar_select %p217, %s21, 0
      %s219 = sadd.s32 %s218, %s216
      %s220 = smul.addr %s219, 4
      %s221 = scalar_lea.vmem %s2, %s220
      %p223 = scmp.eq.s32.totalorder %s20, 0
      %p224 = scmp.eq.s32.totalorder %s21, 0
      %p225 = pnand %p223, %p224
      %p226 = pneg %p225
      // Predicated region
      $region29: #{convolutional_block.2} parent=27 // pred_check
        _
      $region30: #{convolutional_block.2} parent=27 // pred_check_branch
        %228 = sbr.rel (%p225) target = $region32
      $region31: #{convolutional_block.2} parent=27 // pred_region
        %vm229 = vcmask 7168
        %230 = vst.msk [vmem:[%s3] sm:$0xff] %vm229, 0.0
        %231 = vst.msk [vmem:[%s4] sm:$0xff] %vm229, 0.0
      $region32: #{convolutional_block.2} parent=27 // pred_fallthru
        _
      %v232 = vld [vmem:[%s1] sm:$0xf]
      %v233 = vld [vmem:[%s214] sm:$0xf]
      %v234 = vld [vmem:[%s214 + $0x4] sm:$0xf]
      %v235 = vld [vmem:[%s214 + $0x8] sm:$0xf]
      %v236 = vld [vmem:[%s214 + $0xc] sm:$0xf]
      %v237 = vld [vmem:[%s214 + $0x10] sm:$0xf]
      %v238 = vld [vmem:[%s214 + $0x14] sm:$0xf]
      %v239 = vld [vmem:[%s214 + $0x18] sm:$0xf]
      %v240 = vld [vmem:[%s214 + $0x1c] sm:$0xf]
      %v241 = vld [vmem:[%s214 + $0x20] sm:$0xf]
      %v242 = vld [vmem:[%s214 + $0x24] sm:$0xf]
      %v243 = vld [vmem:[%s214 + $0x28] sm:$0xf]
      %v244 = vld [vmem:[%s214 + $0x2c] sm:$0xf]
      %v245 = vld [vmem:[%s214 + $0x30] sm:$0xf]
      %v246 = vld [vmem:[%s214 + $0x34] sm:$0xf]
      %v247 = vld [vmem:[%s214 + $0x38] sm:$0xf]
      %v248 = vld [vmem:[%s214 + $0x3c] sm:$0xf]
      %v265 = vunpack.c.l.b16 %v233
      %v266 = vunpack.c.l.b16 %v234
      %v267 = vunpack.c.l.b16 %v235
      %v268 = vunpack.c.l.b16 %v236
      %v269 = vunpack.c.l.b16 %v237
      %v270 = vunpack.c.l.b16 %v238
      %v271 = vunpack.c.l.b16 %v239
      %v272 = vunpack.c.l.b16 %v240
      %v273 = vunpack.c.l.b16 %v241
      %v274 = vunpack.c.l.b16 %v242
      %v275 = vunpack.c.l.b16 %v243
      %v276 = vunpack.c.l.b16 %v244
      %v277 = vunpack.c.l.b16 %v245
      %v278 = vunpack.c.l.b16 %v246
      %v279 = vunpack.c.l.b16 %v247
      %v280 = vunpack.c.l.b16 %v248
      %v281 = vpack.c.b16 %v266, %v265
      %v282 = vpack.c.b16 %v268, %v267
      %v283 = vpack.c.b16 %v270, %v269
      %v284 = vpack.c.b16 %v272, %v271
      %v285 = vpack.c.b16 %v274, %v273
      %v286 = vpack.c.b16 %v276, %v275
      %v287 = vpack.c.b16 %v278, %v277
      %v288 = vpack.c.b16 %v280, %v279
      %297 = vmatprep.subr.bf16.mxu0 0
      %298 = vmatpush1.bf16.msra.mxu0 %v281
      %299 = vmatprep.subr.bf16.mxu0 0
      %300 = vmatpush1.bf16.msra.mxu0 %v282
      %301 = vmatprep.subr.bf16.mxu0 0
      %302 = vmatpush1.bf16.msra.mxu0 %v283
      %303 = vmatprep.subr.bf16.mxu0 0
      %304 = vmatpush1.bf16.msra.mxu0 %v284
      %305 = vmatprep.subr.bf16.mxu0 0
      %306 = vmatpush1.bf16.msra.mxu0 %v285
      %307 = vmatprep.subr.bf16.mxu0 0
      %308 = vmatpush1.bf16.msra.mxu0 %v286
      %309 = vmatprep.subr.bf16.mxu0 0
      %310 = vmatpush1.bf16.msra.mxu0 %v287
      %311 = vmatprep.subr.bf16.mxu0 0
      %312 = vmatpush1.bf16.msra.mxu0 %v288
      %313 = vmatprep.subr.bf16.mxu0 0
      %314 = vmatpush1.bf16.msra.mxu0 0
      %315 = vmatprep.subr.bf16.mxu0 0
      %316 = vmatpush1.bf16.msra.mxu0 0
      %317 = vmatprep.subr.bf16.mxu0 0
      %318 = vmatpush1.bf16.msra.mxu0 0
      %319 = vmatprep.subr.bf16.mxu0 0
      %320 = vmatpush1.bf16.msra.mxu0 0
      %321 = vmatprep.subr.bf16.mxu0 0
      %322 = vmatpush1.bf16.msra.mxu0 0
      %323 = vmatprep.subr.bf16.mxu0 0
      %324 = vmatpush1.bf16.msra.mxu0 0
      %325 = vmatprep.subr.bf16.mxu0 0
      %326 = vmatpush1.bf16.msra.mxu0 0
      %327 = vmatprep.subr.bf16.mxu0 0
      %328 = vmatpush1.bf16.msra.mxu0 0
      %329 = vmatprep.mubr.bf16.mxu0 0
      %330 = vmatmul.mubr.bf16.gmra.mrb[0].mxu0 %v232
      %v331 = vpop.f32.mrb[0].mxu0
      %v332 = vadd.f32 0.0, %v331
      %v333 = vpop.f32.mrb[0].mxu0
      %v334 = vpop.f32.mrb[0].mxu0
      %v335 = vpop.f32.mrb[0].mxu0
      %336 = vdwg.mxu0
      %v337 = vld [vmem:[%s3] sm:$0xff]
      %vm338 = vcmask 523264
      %v339 = vsel %vm338, %v332, 0.0
      %340 = vadd.xlane.f32.xlu0 %v339
      %v341 = vpop.xlane.xlu0 %340
      %v342 = vadd.f32 %v337, %v341
      %vm343 = vcmask 7168
      %344 = vst.msk [vmem:[%s3] sm:$0xff] %vm343, %v342
      %v345 = vld [vmem:[%s4] sm:$0xff]
      %v346 = vmul.f32 %v332, %v332
      %v347 = vsel %vm338, %v346, 0.0
      %348 = vadd.xlane.f32.xlu0 %v347
      %v349 = vpop.xlane.xlu0 %348
      %v350 = vadd.f32 %v345, %v349
      %351 = vst.msk [vmem:[%s4] sm:$0xff] %vm343, %v350
      %v352 = vpack.c.bf16 %v332, %v332
      %vm353 = vcmask 519168
      %354 = vst.msk [vmem:[%s221] sm:$0xf] %vm353, %v352
      %p355 = scmp.lt.s32.totalorder %s20, 1
      %s356 = scalar_select %p355, %s20, 1
      %p357 = scmp.lt.s32.totalorder %s21, 0
      %s358 = scalar_select %p357, %s21, 0
      %s359 = sadd.s32 %s358, %s356
      %s360 = smul.addr %s359, 4
      %s361 = scalar_lea.vmem %s2, %s360
      // Predicated region
      $region33: #{convolutional_block.2} parent=27 // pred_check
        %p362 = pneg %p97
      $region34: #{convolutional_block.2} parent=27 // pred_check_branch
        %364 = sbr.rel (%p362) target = $region36
      $region35: #{convolutional_block.2} parent=27 // pred_region
        _
      $region36: #{convolutional_block.2} parent=27 // pred_fallthru
        _
      // Predicated region
      $region37: #{convolutional_block.2} parent=27 // pred_check
        %p365 = pneg %p118
      $region38: #{convolutional_block.2} parent=27 // pred_check_branch
        %367 = sbr.rel (%p365) target = $region40
      $region39: #{convolutional_block.2} parent=27 // pred_region
        _
      $region40: #{convolutional_block.2} parent=27 // pred_fallthru
        _
      // Predicated region
      $region41: #{convolutional_block.2} parent=27 // pred_check
        %p368 = pneg %p139
      $region42: #{convolutional_block.2} parent=27 // pred_check_branch
        %370 = sbr.rel (%p368) target = $region44
      $region43: #{convolutional_block.2} parent=27 // pred_region
        _
      $region44: #{convolutional_block.2} parent=27 // pred_fallthru
        _
      // Predicated region
      $region45: #{convolutional_block.2} parent=27 // pred_check
        %p371 = pneg %p118
      $region46: #{convolutional_block.2} parent=27 // pred_check_branch
        %373 = sbr.rel (%p371) target = $region48
      $region47: #{convolutional_block.2} parent=27 // pred_region
        _
      $region48: #{convolutional_block.2} parent=27 // pred_fallthru
        _
      // Predicated region
      $region49: #{convolutional_block.2} parent=27 // pred_check
        %p374 = pneg %p139
      $region50: #{convolutional_block.2} parent=27 // pred_check_branch
        %376 = sbr.rel (%p374) target = $region52
      $region51: #{convolutional_block.2} parent=27 // pred_region
        _
      $region52: #{convolutional_block.2} parent=27 // pred_fallthru
        _
    $region28: #{convolutional_block.2} parent=5 // pred_fallthru
      _
    %p377 = scmp.le.s32.totalorder 2, %s11
    // Predicated region
    $region53: #{convolutional_block.2} parent=5 // pred_check
      %p378 = pneg %p377
    $region54: #{convolutional_block.2} parent=5 // pred_check_branch
      %380 = sbr.rel (%p378) target = $region56
    $region55: #{convolutional_block.2} parent=5 // pred_region
      %s381 = ssub.s32 %s11, 2
      // Predicated region
      $region57: #{convolutional_block.2} parent=55 // pred_check
        %p382 = pneg %p103
      $region58: #{convolutional_block.2} parent=55 // pred_check_branch
        %384 = sbr.rel (%p382) target = $region60
      $region59: #{convolutional_block.2} parent=55 // pred_region
        %p385 = scmp.lt.s32.totalorder %s22, 1
        %s386 = scalar_select %p385, %s22, 1
        %p387 = scmp.lt.s32.totalorder %s23, 0
        %s388 = scalar_select %p387, %s23, 0
        %s389 = sadd.s32 %s388, %s386
        %s390 = smul.addr %s389, 4
        %s391 = scalar_lea.vmem %s2, %s390
      $region60: #{convolutional_block.2} parent=55 // pred_fallthru
        _
    $region56: #{convolutional_block.2} parent=5 // pred_fallthru
      _
  $region6: #{convolutional_block.2} parent=0 // loop_footer
    %s15 = sadd.s32 1, %s11
  $region7: #{convolutional_block.2} parent=0 // loop_footer_branch
    %10 = sbr.rel target = $region3
  $region8: #{convolutional_block.2} parent=0 // loop_exit
    _

</llo_original>
